<compile_context>
chip_gen: v7x
topology: tpu7x:2x2x1
jax: 0.10.0
libtpu: 0.0.40
codegen_flags: <defaults>
</compile_context>

<pallas_src>
import functools

import jax
import jax.numpy as jnp
from jax.experimental import pallas as pl
from jax.experimental.pallas import tpu as pltpu


# Abramowitz & Stegun 4.4.46: arccos(x) = sqrt(1 - x) * poly(x) on [0, 1], |err| <= 2e-8;
# extended to [-1, 0) via arccos(x) = pi - arccos(-x).  Uses only sqrt/mul/add/select.
_ACOS_COEFFS = (-0.0012624911, 0.0066700901, -0.0170881256, 0.0308918810,
                -0.0501743046, 0.0889789874, -0.2145988016, 1.5707963050)


def _acos(x):
    ax = jnp.abs(x)
    p = _ACOS_COEFFS[0]
    for c in _ACOS_COEFFS[1:]:
        p = p * ax + c
    r = jnp.sqrt(jnp.maximum(1.0 - ax, 0.0)) * p
    return jnp.where(x < 0.0, jnp.pi - r, r)


def _inplane_loss_kernel(pred_ref, gt_ref, out_ref, acc_ref, *,
                         loss, normalize, eps, total_elems, tile_rows, width,
                         blocks_per_core, num_blocks, scale):
    step = pl.program_id(1)
    bi = pl.program_id(0) * blocks_per_core + step      # logical row-block index

    @pl.when(step == 0)
    def _init():
        acc_ref[...] = jnp.zeros_like(acc_ref)

    # Full dense blocks; keep all math in f32 (v5e VPU/EUP have no bf16).
    p = pred_ref[...].astype(jnp.float32)
    g = gt_ref[...].astype(jnp.float32)

    if normalize:
        lane_odd = (jax.lax.broadcasted_iota(jnp.int32, p.shape, 1) & 1) == 1

        def _norm(x):
            # Per-pair squared norm broadcast to both lanes of the (cos, sin) pair:
            # partner(j) = sq[j ^ 1]  (cos/sin sit in adjacent even/odd lanes).
            sq = x * x
            pair = sq + jnp.where(lane_odd,
                                  pltpu.roll(sq, 1, 1),
                                  pltpu.roll(sq, width - 1, 1))
            # F.normalize(x, dim=1): x / max(||x||, 1e-12) == x * rsqrt(max(||x||^2, 1e-24)).
            return x * jax.lax.rsqrt(jnp.maximum(pair, 1e-24))

        p = _norm(p)
        g = _norm(g)

    if loss == "geodesic":
        prod = p * g
        # Pair dot product lands on the odd lanes; even lanes hold finite garbage that is
        # discarded (by parity) in the finalize reduction.
        cos_diff = prod + pltpu.roll(prod, 1, 1)
        cos_diff = jnp.clip(cos_diff, -1.0 + eps, 1.0 - eps)
        contrib = _acos(cos_diff)
    elif loss == "l1":
        contrib = jnp.abs(p - g)
    elif loss == "l2":
        d = p - g
        contrib = d * d
    else:
        raise NotImplementedError(loss)

    # Full blocks accumulate unmasked (pure VPU adds into the block-shaped accumulator).
    @pl.when(bi < num_blocks - 1)
    def _full():
        acc_ref[...] += contrib

    # Only the last (possibly partial / replayed-out-of-range) block masks by flat index.
    @pl.when(bi >= num_blocks - 1)
    def _last():
        row = jax.lax.broadcasted_iota(jnp.int32, contrib.shape, 0)
        col = jax.lax.broadcasted_iota(jnp.int32, contrib.shape, 1)
        flat = (bi * tile_rows + row) * width + col
        acc_ref[...] += jnp.where(flat < total_elems, contrib, 0.0)

    @pl.when(step == blocks_per_core - 1)
    def _finalize():
        acc = acc_ref[...]
        if loss == "geodesic":
            lane_odd_f = (jax.lax.broadcasted_iota(jnp.int32, acc.shape, 1) & 1) == 1
            acc = jnp.where(lane_odd_f, acc, 0.0)       # keep one value per pair
        part = jnp.sum(acc, axis=0, keepdims=True)      # sublane reduce -> (1, width)
        part = jnp.sum(part, axis=1, keepdims=True)     # lane reduce    -> (1, 1)
        out_ref[...] = jnp.reshape(part * scale, (1, 1, 1))


def inplane_loss(pred_cos_sin, gt_cos_sin, *, loss="l2", normalize=False,
                 block_bytes=4 * 1024 * 1024, num_cores=None):
    """Pallas equivalent of InplaneLoss(loss, normalize).forward(pred, gt)."""
    if loss not in ("l1", "l2", "geodesic"):
        raise NotImplementedError(loss)
    B, C = pred_cos_sin.shape
    assert C == 2 and gt_cos_sin.shape == (B, 2), "expected (B, 2) cos/sin inputs"
    eps = 1e-6
    total = 2 * B

    # Row-major flatten is free and keeps (cos, sin) adjacent: [c0, s0, c1, s1, ...].
    pred_flat = jnp.reshape(pred_cos_sin, (-1,))
    gt_flat = jnp.reshape(gt_cos_sin, (-1,))

    # Lane width: biggest of {1024..128} dividing 2B -> zero-copy reshape.  Otherwise
    # zero-pad to a multiple of 8*128 (one small copy; padded values are masked in-kernel).
    width = next((c for c in (1024, 512, 256, 128) if total % c == 0), None)
    if width is None:
        width = 128
        padded = -(-total // (8 * width)) * (8 * width)
        pred_flat = jnp.pad(pred_flat, (0, padded - total))
        gt_flat = jnp.pad(gt_flat, (0, padded - total))
        rows = padded // width
    else:
        rows = total // width
    pred2 = jnp.reshape(pred_flat, (rows, width))
    gt2 = jnp.reshape(gt_flat, (rows, width))

    # Row tile: ~block_bytes per input block (multiple of 8 rows), or the full array if small.
    cap_rows = max(8, (block_bytes // (width * 4)) // 8 * 8)
    tile_rows = rows if rows <= cap_rows else cap_rows
    num_blocks = -(-rows // tile_rows)

    # Optional split of the row-block sweep across TensorCores (2 on v7x; serial elsewhere).
    if num_cores is None:
        try:
            num_cores = 2 if "v7" in jax.devices()[0].device_kind.lower() else 1
        except Exception:  # pragma: no cover
            num_cores = 1
    num_cores = max(1, min(num_cores, num_blocks))
    blocks_per_core = -(-num_blocks // num_cores)

    denom = float(B) if loss == "geodesic" else float(total)
    kernel = functools.partial(
        _inplane_loss_kernel, loss=loss, normalize=normalize, eps=eps,
        total_elems=total, tile_rows=tile_rows, width=width,
        blocks_per_core=blocks_per_core, num_blocks=num_blocks, scale=1.0 / denom)

    last_block = num_blocks - 1

    def in_map(c, s):
        # Clamp so a trailing core never issues a fully out-of-range DMA; its
        # contributions are masked to zero in-kernel via the flat-index test.
        return (jnp.minimum(c * blocks_per_core + s, last_block), 0)

    partials = pl.pallas_call(
        kernel,
        out_shape=jax.ShapeDtypeStruct((num_cores, 1, 1), jnp.float32),
        grid_spec=pltpu.PrefetchScalarGridSpec(
            num_scalar_prefetch=0,
            grid=(num_cores, blocks_per_core),
            in_specs=[pl.BlockSpec((tile_rows, width), in_map),
                      pl.BlockSpec((tile_rows, width), in_map)],
            out_specs=pl.BlockSpec((1, 1, 1), lambda c, s: (c, 0, 0)),
            scratch_shapes=[pltpu.VMEM((tile_rows, width), jnp.float32)],
        ),
        compiler_params=pltpu.CompilerParams(
            dimension_semantics=("parallel", "arbitrary"),
            vmem_limit_bytes=48 * 1024 * 1024),
    )(pred2, gt2)
    # Sum per-core partial losses (already scaled by 1/N).
    return jnp.sum(partials)


if __name__ == "__main__":
    key = jax.random.PRNGKey(0)
    k1, k2, k3, k4 = jax.random.split(key, 4)

    def _normalize_ref(x):
        return x / jnp.maximum(jnp.linalg.norm(x, axis=1, keepdims=True), 1e-12)

    def _ref(pred, gt, loss, normalize):
        if normalize:
            pred, gt = _normalize_ref(pred), _normalize_ref(gt)
        if loss == "geodesic":
            cd = pred[:, 0] * gt[:, 0] + pred[:, 1] * gt[:, 1]
            cd = jnp.clip(cd, -1.0 + 1e-6, 1.0 - 1e-6)
            return jnp.mean(jnp.arccos(cd))
        if loss == "l1":
            return jnp.mean(jnp.abs(pred - gt))
        return jnp.mean((pred - gt) ** 2)

    checks = []

    # 1) Default module config (l2, no normalize), tiny batch.
    B = 8
    pred = jax.random.normal(k1, (B, 2), dtype=jnp.float32)
    gt = jax.random.normal(k2, (B, 2), dtype=jnp.float32)
    checks.append((inplane_loss(pred, gt, loss="l2"), _ref(pred, gt, "l2", False)))

    # 2) l1 + normalize (rsqrt + pair-broadcast roll path).
    checks.append((inplane_loss(pred, gt, loss="l1", normalize=True),
                   _ref(pred, gt, "l1", True)))

    # 3) geodesic + normalize (roll pair-dot + polynomial arccos), zero-pad path.
    Bg = 200
    pg = jax.random.normal(k3, (Bg, 2), dtype=jnp.float32)
    gg = jax.random.normal(k4, (Bg, 2), dtype=jnp.float32)
    checks.append((inplane_loss(pg, gg, loss="geodesic", normalize=True),
                   _ref(pg, gg, "geodesic", True)))

    # 4) geodesic without normalize, zero-copy reshape path (2B % 128 == 0).
    checks.append((inplane_loss(pg[:64], gg[:64], loss="geodesic"),
                   _ref(pg[:64], gg[:64], "geodesic", False)))

    # 5) Multi-block sweep + 2-core partial-sum merge (tiny forced tiles; serial on 1-TC chips).
    B2 = 600
    k5, k6 = jax.random.split(k4)
    pred_big = jax.random.normal(k5, (B2, 2), dtype=jnp.float32)
    gt_big = jax.random.normal(k6, (B2, 2), dtype=jnp.float32)
    checks.append((inplane_loss(pred_big, gt_big, loss="l2", normalize=True,
                                block_bytes=4096, num_cores=2),
                   _ref(pred_big, gt_big, "l2", True)))

    for got, want in checks:
        got = jax.block_until_ready(got)
        assert not jnp.isnan(got), got                      # mirrors the module's assert
        assert jnp.allclose(got, want, atol=1e-5, rtol=1e-5), (got, want)

    print("KERNEL_OK")
</pallas_src>

<mosaic_0001>
module attributes {stable_mosaic.version = 11 : i64} {
  func.func @_inplane_loss_kernel(%arg0: i32, %arg1: i32, %arg2: memref<8x128xf32, #tpu.memory_space<vmem>>, %arg3: memref<8x128xf32, #tpu.memory_space<vmem>>, %arg4: memref<1x1x1xf32, #tpu.memory_space<vmem>>, %arg5: memref<8x128xf32, #tpu.memory_space<vmem>>) attributes {dimension_semantics = [#tpu.dimension_semantics<parallel>, #tpu.dimension_semantics<arbitrary>], iteration_bounds = array<i64: 1, 1>, scalar_prefetch = 0 : i64, scratch_operands = 1 : i64, tpu.core_type = #tpu.core_type<tc>, window_params = [{transform_indices = @transform_0, window_bounds = array<i64: 8, 128>}, {transform_indices = @transform_1, window_bounds = array<i64: 8, 128>}, {transform_indices = @transform_2, window_bounds = array<i64: 1, 1, 1>}]} {
    %c1_i32 = arith.constant 1 : i32
    %0 = arith.muli %arg0, %c1_i32 : i32
    %1 = arith.addi %0, %arg1 : i32
    %c0_i32 = arith.constant 0 : i32
    %2 = arith.cmpi eq, %arg1, %c0_i32 : i32
    %3 = arith.extui %2 : i1 to i32
    %c0_i32_0 = arith.constant 0 : i32
    %4 = arith.cmpi ne, %3, %c0_i32_0 : i32
    scf.if %4 {
      %cst = arith.constant 0.000000e+00 : f32
      %18 = vector.broadcast %cst : f32 to vector<8x128xf32>
      %c0_10 = arith.constant 0 : index
      %c0_11 = arith.constant 0 : index
      %19 = vector.load %arg5[%c0_10, %c0_11] : memref<8x128xf32, #tpu.memory_space<vmem>>, vector<8x128xf32>
      tpu.vector_store %arg5[%c0_10, %c0_11], %18 {strides = array<i32>} : memref<8x128xf32, #tpu.memory_space<vmem>>, vector<8x128xf32>,
    } else {
    }
    %c0 = arith.constant 0 : index
    %c0_1 = arith.constant 0 : index
    %5 = vector.load %arg2[%c0, %c0_1] : memref<8x128xf32, #tpu.memory_space<vmem>>, vector<8x128xf32>
    %c0_2 = arith.constant 0 : index
    %c0_3 = arith.constant 0 : index
    %6 = vector.load %arg3[%c0_2, %c0_3] : memref<8x128xf32, #tpu.memory_space<vmem>>, vector<8x128xf32>
    %7 = arith.subf %5, %6 : vector<8x128xf32>
    %8 = arith.mulf %7, %7 : vector<8x128xf32>
    %c0_i32_4 = arith.constant 0 : i32
    %9 = arith.cmpi slt, %1, %c0_i32_4 : i32
    %10 = arith.extui %9 : i1 to i32
    %c0_i32_5 = arith.constant 0 : i32
    %11 = arith.cmpi ne, %10, %c0_i32_5 : i32
    scf.if %11 {
      %c0_10 = arith.constant 0 : index
      %c0_11 = arith.constant 0 : index
      %18 = vector.load %arg5[%c0_10, %c0_11] : memref<8x128xf32, #tpu.memory_space<vmem>>, vector<8x128xf32>
      %19 = arith.addf %18, %8 : vector<8x128xf32>
      %c0_12 = arith.constant 0 : index
      %c0_13 = arith.constant 0 : index
      %20 = vector.load %arg5[%c0_12, %c0_13] : memref<8x128xf32, #tpu.memory_space<vmem>>, vector<8x128xf32>
      tpu.vector_store %arg5[%c0_12, %c0_13], %19 {strides = array<i32>} : memref<8x128xf32, #tpu.memory_space<vmem>>, vector<8x128xf32>,
    } else {
    }
    %c0_i32_6 = arith.constant 0 : i32
    %12 = arith.cmpi sge, %1, %c0_i32_6 : i32
    %13 = arith.extui %12 : i1 to i32
    %c0_i32_7 = arith.constant 0 : i32
    %14 = arith.cmpi ne, %13, %c0_i32_7 : i32
    scf.if %14 {
      %18 = tpu.iota {dimensions = array<i32: 0>} : vector<8x128xi32>
      %19 = tpu.iota {dimensions = array<i32: 1>} : vector<8x128xi32>
      %c8_i32 = arith.constant 8 : i32
      %20 = arith.muli %1, %c8_i32 : i32
      %21 = vector.broadcast %20 : i32 to vector<8x128xi32>
      %22 = arith.addi %21, %18 : vector<8x128xi32>
      %c128_i32 = arith.constant 128 : i32
      %23 = vector.broadcast %c128_i32 : i32 to vector<8x128xi32>
      %24 = arith.muli %22, %23 : vector<8x128xi32>
      %25 = arith.addi %24, %19 : vector<8x128xi32>
      %c0_10 = arith.constant 0 : index
      %c0_11 = arith.constant 0 : index
      %26 = vector.load %arg5[%c0_10, %c0_11] : memref<8x128xf32, #tpu.memory_space<vmem>>, vector<8x128xf32>
      %c16_i32 = arith.constant 16 : i32
      %27 = vector.broadcast %c16_i32 : i32 to vector<8x128xi32>
      %28 = arith.cmpi slt, %25, %27 : vector<8x128xi32>
      %cst = arith.constant 0.000000e+00 : f32
      %29 = vector.broadcast %cst : f32 to vector<8x128xf32>
      %30 = arith.select %28, %8, %29 : vector<8x128xi1>, vector<8x128xf32>
      %31 = arith.addf %26, %30 : vector<8x128xf32>
      %c0_12 = arith.constant 0 : index
      %c0_13 = arith.constant 0 : index
      %32 = vector.load %arg5[%c0_12, %c0_13] : memref<8x128xf32, #tpu.memory_space<vmem>>, vector<8x128xf32>
      tpu.vector_store %arg5[%c0_12, %c0_13], %31 {strides = array<i32>} : memref<8x128xf32, #tpu.memory_space<vmem>>, vector<8x128xf32>,
    } else {
    }
    %c0_i32_8 = arith.constant 0 : i32
    %15 = arith.cmpi eq, %arg1, %c0_i32_8 : i32
    %16 = arith.extui %15 : i1 to i32
    %c0_i32_9 = arith.constant 0 : i32
    %17 = arith.cmpi ne, %16, %c0_i32_9 : i32
    scf.if %17 {
      %c0_10 = arith.constant 0 : index
      %c0_11 = arith.constant 0 : index
      %18 = vector.load %arg5[%c0_10, %c0_11] : memref<8x128xf32, #tpu.memory_space<vmem>>, vector<8x128xf32>
      %cst = arith.constant dense<0.000000e+00> : vector<128xf32>
      %19 = vector.multi_reduction <add>, %18, %cst [0] : vector<8x128xf32> to vector<128xf32>
      %20 = vector.shape_cast %19 : vector<128xf32> to vector<1x128xf32>
      %cst_12 = arith.constant dense<0.000000e+00> : vector<1xf32>
      %21 = vector.multi_reduction <add>, %20, %cst_12 [1] : vector<1x128xf32> to vector<1xf32>
      %22 = vector.shape_cast %21 : vector<1xf32> to vector<1x1xf32>
      %cst_13 = arith.constant 6.250000e-02 : f32
      %23 = vector.broadcast %cst_13 : f32 to vector<1x1xf32>
      %24 = arith.mulf %22, %23 : vector<1x1xf32>
      %25 = vector.shape_cast %24 : vector<1x1xf32> to vector<1x1x1xf32>
      %c0_14 = arith.constant 0 : index
      %c0_15 = arith.constant 0 : index
      %c0_16 = arith.constant 0 : index
      %26 = vector.load %arg4[%c0_14, %c0_15, %c0_16] : memref<1x1x1xf32, #tpu.memory_space<vmem>>, vector<1x1x1xf32>
      tpu.vector_store %arg4[%c0_14, %c0_15, %c0_16], %25 {strides = array<i32>} : memref<1x1x1xf32, #tpu.memory_space<vmem>>, vector<1x1x1xf32>,
    } else {
    }
    return
  }
  func.func @transform_0(%arg0: i32, %arg1: i32) -> (i32, i32) {
    %c1_i32 = arith.constant 1 : i32
    %0 = arith.muli %arg0, %c1_i32 : i32
    %1 = arith.addi %0, %arg1 : i32
    %c0_i32 = arith.constant 0 : i32
    %2 = arith.minsi %1, %c0_i32 : i32
    %c0_i32_0 = arith.constant 0 : i32
    %c0_i32_1 = arith.constant 0 : i32
    return %2, %c0_i32_0 : i32, i32
  }
  func.func @transform_1(%arg0: i32, %arg1: i32) -> (i32, i32) {
    %c1_i32 = arith.constant 1 : i32
    %0 = arith.muli %arg0, %c1_i32 : i32
    %1 = arith.addi %0, %arg1 : i32
    %c0_i32 = arith.constant 0 : i32
    %2 = arith.minsi %1, %c0_i32 : i32
    %c0_i32_0 = arith.constant 0 : i32
    %c0_i32_1 = arith.constant 0 : i32
    return %2, %c0_i32_0 : i32, i32
  }
  func.func @transform_2(%arg0: i32, %arg1: i32) -> (i32, i32, i32) {
    %c0_i32 = arith.constant 0 : i32
    %c0_i32_0 = arith.constant 0 : i32
    %c0_i32_1 = arith.constant 0 : i32
    return %arg0, %c0_i32, %c0_i32_0 : i32, i32, i32
  }
}

</mosaic_0001>

<llo_original>
// kernel: tpu_custom_call.1
$region0: #{tpu_custom_call.1}
  #allocation0 [shape = 'u32[]', space=smem, size = 0x4, offset = 0x4, fixed_abs, tag = 'smem constant byte address 0x4 - core index']
  #allocation1 [shape = 'u32[144,128]{1,0:T(1,128)}', space=vmem, size = 0x12000, scoped, tag = 'internal scratch']
  #allocation2 [shape = 'f32[8,128]{1,0:T(8,128)}', space=vmem, size = 0x1000, scoped, tag = 'scratch operand']
  %s0 = inlined_call_operand.hbm [shape: f32[8,128], index: 0, kind: input, shape index: {}]
  %s1 = inlined_call_operand.hbm [shape: f32[8,128], index: 1, kind: input, shape index: {}]
  %s2 = inlined_call_operand.hbm [shape: f32[1,1,1], index: 2, kind: output, shape index: {}]
  %s3 = sld [smem:[#allocation0]]
  $region42: #{tpu_custom_call.1} parent=0
    _
  %s5 = ssub.s32 1, %s3
  %s6 = scalar_select 0, %s5, %s3
  $region1: #{tpu_custom_call.1} parent=0
    #allocation3 [shape = 'u8[4096]{0}', space=vmem, size = 0x1000, scoped, tag = 'input window, operand 0, single buffered']
    #allocation4 [shape = 's32[1]{0}', space=sflag, size = 0x4, scoped, tag = 'scoped memory for tpu_custom_call.1']
    #allocation5 [shape = 's32[1]{0}', space=sflag, size = 0x4, scoped, tag = 'scoped memory for tpu_custom_call.1']
    #allocation6 [shape = 'u8[4096]{0}', space=vmem, size = 0x1000, scoped, tag = 'input window, operand 1, single buffered']
    #allocation7 [shape = 's32[1]{0}', space=sflag, size = 0x4, scoped, tag = 'scoped memory for tpu_custom_call.1']
    #allocation8 [shape = 'u8[512]{0}', space=vmem, size = 0x400, scoped, tag = 'output window, operand 0, single buffered']
    %7 = vsyncpa [#allocation4], 0
    %8 = vsyncpa [#allocation7], 0
    %9 = vsyncpa [#allocation5], 0
    // Predicated region
    $region2: #{tpu_custom_call.1} parent=1 // pred_check
      _
    $region3: #{tpu_custom_call.1} parent=1 // pred_check_branch
      %11 = sbr.rel (0) target = $region5
    $region4: #{tpu_custom_call.1} parent=1 // pred_region
      %s12 = sadd.s32 0, 0
      %p13 = scmp.lt.s32.totalorder %s12, 0
      %s14 = scalar_select %p13, %s12, 0
      %s16 = ssub.s32 128, 128
      %17 = vsyncadd [#allocation4], %s16
      %s18 = smul.addr %s14, 128
      %s19 = scalar_lea.hbm %s0, %s18
      %s21 = sshll.u32 [#allocation3], 4
      %s22 = int_to_ptr.vmem [resolvable:$true] %s21
      %24 = dma.hbm_to_vmem [thread:$0]  %s19, 128, %s22, [#allocation4]
    $region5: #{tpu_custom_call.1} parent=1 // pred_fallthru
      _
    // Predicated region
    $region6: #{tpu_custom_call.1} parent=1 // pred_check
      _
    $region7: #{tpu_custom_call.1} parent=1 // pred_check_branch
      %26 = sbr.rel (0) target = $region9
    $region8: #{tpu_custom_call.1} parent=1 // pred_region
      %s27 = sadd.s32 0, 0
      %p28 = scmp.lt.s32.totalorder %s27, 0
      %s29 = scalar_select %p28, %s27, 0
      %s31 = ssub.s32 128, 128
      %32 = vsyncadd [#allocation7], %s31
      %s33 = smul.addr %s29, 128
      %s34 = scalar_lea.hbm %s1, %s33
      %s36 = sshll.u32 [#allocation6], 4
      %s37 = int_to_ptr.vmem [resolvable:$true] %s36
      %39 = dma.hbm_to_vmem [thread:$0]  %s34, 128, %s37, [#allocation7]
    $region9: #{tpu_custom_call.1} parent=1 // pred_fallthru
      _
    // Predicated region
    $region10: #{tpu_custom_call.1} parent=1 // pred_check
      _
    $region11: #{tpu_custom_call.1} parent=1 // pred_check_branch
      %41 = sbr.rel (0) target = $region13
    $region12: #{tpu_custom_call.1} parent=1 // pred_region
      %42 = dma.done [#allocation4], 128
    $region13: #{tpu_custom_call.1} parent=1 // pred_fallthru
      _
    // Predicated region
    $region14: #{tpu_custom_call.1} parent=1 // pred_check
      _
    $region15: #{tpu_custom_call.1} parent=1 // pred_check_branch
      %44 = sbr.rel (0) target = $region17
    $region16: #{tpu_custom_call.1} parent=1 // pred_region
      %45 = dma.done [#allocation7], 128
    $region17: #{tpu_custom_call.1} parent=1 // pred_fallthru
      _
    %s46 = sadd.s32 0, 0
    %p47 = scmp.lt.s32.totalorder %s46, 0
    %s48 = scalar_select %p47, %s46, 0
    %s49 = sadd.s32 0, 0
    %p50 = scmp.lt.s32.totalorder %s49, 0
    %s51 = scalar_select %p50, %s49, 0
    %s52 = sadd.s32 0, 0
    %p53 = scmp.eq.s32.totalorder 0, 0
    // Predicated region
    $region18: #{tpu_custom_call.1} parent=1 // pred_check
      %p54 = pneg %p53
    $region19: #{tpu_custom_call.1} parent=1 // pred_check_branch
      %56 = sbr.rel (%p54) target = $region21
    $region20: #{tpu_custom_call.1} parent=1 // pred_region
      %57 = vst [vmem:[#allocation2] sm:$0xff] 0.0
    $region21: #{tpu_custom_call.1} parent=1 // pred_fallthru
      _
    %v58 = vld [vmem:[#allocation3] sm:$0xff]
    %v59 = vld [vmem:[#allocation6] sm:$0xff]
    %v60 = vsub.f32 %v58, %v59
    %v61 = vmul.f32 %v60, %v60
    %p62 = scmp.lt.s32.totalorder %s52, 0
    // Predicated region
    $region22: #{tpu_custom_call.1} parent=1 // pred_check
      %p63 = pneg %p62
    $region23: #{tpu_custom_call.1} parent=1 // pred_check_branch
      %65 = sbr.rel (%p63) target = $region25
    $region24: #{tpu_custom_call.1} parent=1 // pred_region
      %v66 = vld [vmem:[#allocation2] sm:$0xff]
      %v67 = vadd.f32 %v66, %v61
      %68 = vst [vmem:[#allocation2] sm:$0xff] %v67
    $region25: #{tpu_custom_call.1} parent=1 // pred_fallthru
      _
    %p69 = scmp.ge.s32.totalorder %s52, 0
    // Predicated region
    $region26: #{tpu_custom_call.1} parent=1 // pred_check
      %p70 = pneg %p69
    $region27: #{tpu_custom_call.1} parent=1 // pred_check_branch
      %72 = sbr.rel (%p70) target = $region29
    $region28: #{tpu_custom_call.1} parent=1 // pred_region
      %v73 = vlaneseq
      %v74 = vshrl.u32 %v73, 7
      %v75 = vlaneseq
      %v76 = vand.u32 %v75, 127
      %s77 = smul.u32 %s52, 8
      %v78 = vstv %s77
      %v79 = vadd.s32 %v78, %v74
      %v80 = vmul.u32 %v79, 128
      %v81 = vadd.s32 %v80, %v76
      %v82 = vld [vmem:[#allocation2] sm:$0xff]
      %vm83 = vcmp.lt.s32.totalorder %v81, 16
      %v84 = vsel %vm83, %v61, 0.0
      %v85 = vadd.f32 %v82, %v84
      %86 = vst [vmem:[#allocation2] sm:$0xff] %v85
    $region29: #{tpu_custom_call.1} parent=1 // pred_fallthru
      _
    // Predicated region
    $region30: #{tpu_custom_call.1} parent=1 // pred_check
      %p87 = pneg %p53
    $region31: #{tpu_custom_call.1} parent=1 // pred_check_branch
      %89 = sbr.rel (%p87) target = $region33
    $region32: #{tpu_custom_call.1} parent=1 // pred_region
      %v90 = vld [vmem:[#allocation2] sm:$0xff]
      %v91 = vrot.slane %v90, 4
      %v92 = vadd.f32 %v90, %v91
      %v93 = vrot.slane %v92, 2
      %v94 = vadd.f32 %v92, %v93
      %v95 = vrot.slane %v94, 1
      %v96 = vadd.f32 %v94, %v95
      %97 = vadd.xlane.f32.xlu0 %v96
      %v98 = vpop.xlane.xlu0 %97
      %v99 = vmul.f32 %v98, 0.0625
      %vm100 = vcmask 0
      %101 = vst.msk [vmem:[#allocation8] sm:$0x1] %vm100, %v99
    $region33: #{tpu_custom_call.1} parent=1 // pred_fallthru
      _
    // Predicated region
    $region34: #{tpu_custom_call.1} parent=1 // pred_check
      _
    $region35: #{tpu_custom_call.1} parent=1 // pred_check_branch
      %103 = sbr.rel (0) target = $region37
    $region36: #{tpu_custom_call.1} parent=1 // pred_region
      %s105 = ssub.s32 16, 16
      %106 = vsyncadd [#allocation5], %s105
      %s108 = sshll.u32 [#allocation8], 4
      %s109 = int_to_ptr.vmem [resolvable:$true] %s108
      %111 = dma.vmem_to_hbm [thread:$0]  %s109, 16, %s2, [#allocation5]
    $region37: #{tpu_custom_call.1} parent=1 // pred_fallthru
      _
    // Predicated region
    $region38: #{tpu_custom_call.1} parent=1 // pred_check
      _
    $region39: #{tpu_custom_call.1} parent=1 // pred_check_branch
      %113 = sbr.rel (0) target = $region41
    $region40: #{tpu_custom_call.1} parent=1 // pred_region
      %114 = dma.done [#allocation5], 16
    $region41: #{tpu_custom_call.1} parent=1 // pred_fallthru
      _
    %115 = vsyncpa [#allocation4], 1
    %116 = vsyncpa [#allocation7], 1
    %117 = vsyncpa [#allocation5], 1

</llo_original>
